<compile_context>
chip_gen: v7x
topology: tpu7x:2x2x1
jax: 0.10.0
libtpu: 0.0.40
codegen_flags: <defaults>
</compile_context>

<pallas_src>
import functools

import numpy as np
import jax
import jax.numpy as jnp
from jax.experimental import pallas as pl
from jax.experimental.pallas import tpu as pltpu


def _round_up(x: int, m: int) -> int:
    return ((x + m - 1) // m) * m


def _detect_vmem_bytes() -> int:
    """Best-effort per-TensorCore physical VMEM query."""
    try:
        info = pltpu.get_tpu_info()
        v = getattr(info, "vmem_capacity_bytes", None)
        if v:
            return int(v)
    except Exception:
        pass
    try:
        kind = jax.devices()[0].device_kind.lower()
        if "v7" in kind or "tpu7" in kind:
            return 64 * 1024 * 1024
        if "v5" in kind or "v6" in kind:
            return 128 * 1024 * 1024
    except Exception:
        pass
    return 64 * 1024 * 1024  # conservative fallback


def _hw_config():
    vmem = _detect_vmem_bytes()
    big = vmem >= 100 * 1024 * 1024
    return {
        # v5e/v6e: ~100 MiB scoped limit; v7x: ~52 MiB (leave headroom of 64 MiB phys).
        "vmem_limit": int(min(100 * 1024 * 1024,
                              max(32 * 1024 * 1024, vmem - 12 * 1024 * 1024))),
        "tm_target": 1024 if big else 512,   # big row tiles -> compute-bound on v6e
        "th_target": 256,                    # MXU-aligned hidden tile, caps f32 temps
        "weight_buffers": 3 if big else 2,   # deeper weight streaming where VMEM allows
    }


def _pick_hidden_tile(H: int, target: int):
    """Return (th, Hp): th a 128-multiple divisor of Hp, Hp == H whenever possible."""
    if H <= target:
        return H, H
    t = (target // 128) * 128
    while t >= 128:
        if H % t == 0:
            return t, H
        t -= 128
    # Ragged H: pad once at weight-prep time (NOT per call) to a 128-multiple.
    Hp = _round_up(H, 128)
    t = (target // 128) * 128
    while t > 128 and Hp % t != 0:
        t -= 128
    return t, Hp


def _weight_spec(block_shape, index_map, buffers):
    """BlockSpec for a streamed weight, with optional N-deep buffering."""
    if buffers and buffers > 2 and hasattr(pl, "Buffered"):
        try:
            return pl.BlockSpec(block_shape, index_map,
                                pipeline_mode=pl.Buffered(buffers))
        except TypeError:
            pass
    return pl.BlockSpec(block_shape, index_map)


# ---------------------------------------------------------------------------
# Kernels
# ---------------------------------------------------------------------------
def _ffn_step(x_ref, wg_ref, w2_ref, acc_ref, th):
    # Cast once; with bf16-prepared weights and pre-cast activations this is a no-op.
    x = x_ref[...].astype(wg_ref.dtype)
    # One fused MXU pass for the gate+up projection: (tm, 2*th) f32.
    h = jnp.dot(x, wg_ref[...], preferred_element_type=jnp.float32)
    h1 = h[:, :th]
    h3 = h[:, th:]
    gated = (h1 * jax.nn.sigmoid(h1)) * h3            # SiLU gate: VPU + EUP
    acc_ref[...] += jnp.dot(gated.astype(w2_ref.dtype), w2_ref[...],
                            preferred_element_type=jnp.float32)


def _ffn_kernel_inplace(x_ref, wg_ref, w2_ref, o_ref, *, th):
    # f32 output: accumulate directly into the resident output block (no scratch).
    k = pl.program_id(1)

    @pl.when(k == 0)
    def _():
        o_ref[...] = jnp.zeros_like(o_ref)

    _ffn_step(x_ref, wg_ref, w2_ref, o_ref, th)


def _ffn_kernel_scratch(x_ref, wg_ref, w2_ref, o_ref, acc_ref, *, th):
    # Non-f32 output: f32 VMEM accumulator with init / finalize.
    k = pl.program_id(1)

    @pl.when(k == 0)
    def _():
        acc_ref[...] = jnp.zeros_like(acc_ref)

    _ffn_step(x_ref, wg_ref, w2_ref, acc_ref, th)

    @pl.when(k == pl.num_programs(1) - 1)
    def _():
        o_ref[...] = acc_ref[...].astype(o_ref.dtype)


# ---------------------------------------------------------------------------
# Builder: one-time weight prep (fuse + cast) -> jitted apply(x)
# ---------------------------------------------------------------------------
def build_feed_forward(w1_t, w3_t, w2_t, *, weight_dtype=jnp.bfloat16,
                       tm=None, th=None):
    """One-time weight preparation; returns apply(x) with torch-FFN semantics.

    w1_t, w3_t: [D, H] (= torch w1.weight.T / w3.weight.T)
    w2_t:       [H, D] (= torch w2.weight.T)
    """
    D, H = w1_t.shape
    cfg = _hw_config()
    tm_target = int(tm) if tm is not None else cfg["tm_target"]
    w_bufs = cfg["weight_buffers"]
    vmem_limit = cfg["vmem_limit"]

    if th is not None:
        th_eff = int(th)
        Hp = _round_up(H, th_eff)
    else:
        th_eff, Hp = _pick_hidden_tile(H, cfg["th_target"])
    Kt = Hp // th_eff

    wd = jnp.dtype(weight_dtype) if weight_dtype is not None else jnp.asarray(w1_t).dtype
    # --- one-time weight prep (outside the per-call hot path) ---
    w1_p = jnp.asarray(w1_t).astype(wd)
    w3_p = jnp.asarray(w3_t).astype(wd)
    w2_p = jnp.asarray(w2_t).astype(wd)
    if Hp != H:
        w1_p = jnp.pad(w1_p, ((0, 0), (0, Hp - H)))
        w3_p = jnp.pad(w3_p, ((0, 0), (0, Hp - H)))
        w2_p = jnp.pad(w2_p, ((0, Hp - H), (0, 0)))
    # Fused gate+up weight, per-tile interleaved: tile k = [w1_k | w3_k], shape (D, 2*Hp).
    wg = jnp.concatenate(
        [w1_p.reshape(D, Kt, th_eff), w3_p.reshape(D, Kt, th_eff)], axis=2
    ).reshape(D, 2 * Hp)
    wg = jax.block_until_ready(wg)
    w2_p = jax.block_until_ready(w2_p)

    compute_dtype = wd
    w_isize = np.dtype(wd).itemsize
    x_isize = w_isize
    row_granule = 16 if w_isize == 2 else 8

    @jax.jit
    def _apply(x, wg_arg, w2_arg):
        orig_shape = x.shape
        out_dtype = x.dtype
        out_isize = np.dtype(out_dtype).itemsize
        acc_in_out = out_dtype == jnp.float32

        x2d = x.reshape(-1, D).astype(compute_dtype)
        M = x2d.shape[0]

        # Row tile: large for prefill-sized M, shrink-to-fit for decode-sized M.
        if M >= tm_target:
            tm_eff = tm_target
        else:
            tm_eff = _round_up(M, row_granule)

        def _vmem_need(tmv):
            b = 2 * tmv * D * x_isize                               # x blocks (2 bufs)
            b += w_bufs * (D * 2 * th_eff + th_eff * D) * w_isize   # streamed weights
            b += 2 * tmv * D * out_isize                            # output blocks
            if not acc_in_out:
                b += tmv * D * 4                                    # f32 accumulator
            b += tmv * 3 * th_eff * 4                               # f32 h/gated temps
            return b

        while tm_eff > 256 and _vmem_need(tm_eff) > int(0.8 * vmem_limit):
            tm_eff = max(256, tm_eff // 2)

        Mp = _round_up(M, tm_eff)
        if Mp != M:
            x2d = jnp.pad(x2d, ((0, Mp - M), (0, 0)))

        grid = (Mp // tm_eff, Kt)

        if acc_in_out:
            kernel = functools.partial(_ffn_kernel_inplace, th=th_eff)
            scratch_shapes = []
        else:
            kernel = functools.partial(_ffn_kernel_scratch, th=th_eff)
            scratch_shapes = [pltpu.VMEM((tm_eff, D), jnp.float32)]

        out = pl.pallas_call(
            kernel,
            out_shape=jax.ShapeDtypeStruct((Mp, D), out_dtype),
            grid_spec=pltpu.PrefetchScalarGridSpec(
                num_scalar_prefetch=0,
                grid=grid,
                in_specs=[
                    # x row tile: constant along k -> fetched once per row tile.
                    pl.BlockSpec((tm_eff, D), lambda i, k: (i, 0)),
                    # Fused gate+up weight tile [w1_k | w3_k], streamed along k.
                    _weight_spec((D, 2 * th_eff), lambda i, k: (0, k), w_bufs),
                    # Down-projection tile, streamed along k.
                    _weight_spec((th_eff, D), lambda i, k: (k, 0), w_bufs),
                ],
                out_specs=pl.BlockSpec((tm_eff, D), lambda i, k: (i, 0)),
                scratch_shapes=scratch_shapes,
            ),
            compiler_params=pltpu.CompilerParams(
                dimension_semantics=("parallel", "arbitrary"),
                vmem_limit_bytes=vmem_limit,
            ),
        )(x2d, wg_arg, w2_arg)

        if Mp != M:
            out = out[:M]
        return out.reshape(orig_shape)

    def apply(x):
        return _apply(x, wg, w2_p)

    return apply


def feed_forward_ref(x, w1_t, w3_t, w2_t):
    h1 = x @ w1_t
    h3 = x @ w3_t
    return (jax.nn.silu(h1) * h3) @ w2_t


if __name__ == "__main__":
    # ModelArgs-style small sizes: dim=128, hidden_dim=256, batch=2, seq=8.
    B, S, DIM, HIDDEN = 2, 8, 128, 256

    key = jax.random.PRNGKey(0)
    kx, k1, k2, k3 = jax.random.split(key, 4)

    x = jax.random.normal(kx, (B, S, DIM), dtype=jnp.float32)
    # Deterministic synthetic weights; stored as (in, out) = torch weight.T.
    w1_t = jax.random.normal(k1, (DIM, HIDDEN), dtype=jnp.float32) * 0.05
    w3_t = jax.random.normal(k3, (DIM, HIDDEN), dtype=jnp.float32) * 0.05
    w2_t = jax.random.normal(k2, (HIDDEN, DIM), dtype=jnp.float32) * 0.05

    y_ref = feed_forward_ref(x, w1_t, w3_t, w2_t)

    # 1) f32-weight path: tight numerical check of the kernel math.
    ffn_f32 = build_feed_forward(w1_t, w3_t, w2_t, weight_dtype=jnp.float32)
    y = jax.block_until_ready(ffn_f32(x))
    assert y.shape == x.shape
    assert jnp.allclose(y, y_ref, atol=1e-4, rtol=1e-4), "mismatch (f32 path)"

    # 2) Default production path: bf16 weights / bf16 MXU, f32 accumulation.
    ffn_bf16 = build_feed_forward(w1_t, w3_t, w2_t)
    y_bf = jax.block_until_ready(ffn_bf16(x))
    assert y_bf.shape == x.shape
    assert jnp.allclose(y_bf.astype(jnp.float32), y_ref, atol=3e-2, rtol=3e-2), \
        "mismatch (bf16 path)"

    # 3) Ragged row count + explicit small hidden tile (exercises row padding
    #    and the k-reduction with multiple hidden tiles).
    x2 = jax.random.normal(jax.random.PRNGKey(1), (3, 5, DIM), dtype=jnp.float32)
    ffn_k = build_feed_forward(w1_t, w3_t, w2_t, weight_dtype=jnp.float32, th=128)
    y2 = jax.block_until_ready(ffn_k(x2))
    y2_ref = feed_forward_ref(x2, w1_t, w3_t, w2_t)
    assert y2.shape == x2.shape
    assert jnp.allclose(y2, y2_ref, atol=1e-4, rtol=1e-4), "mismatch (padded rows)"

    print("KERNEL_OK")
</pallas_src>

<mosaic_0001>
module attributes {stable_mosaic.version = 11 : i64} {
  func.func @_ffn_kernel_inplace(%arg0: i32, %arg1: i32, %arg2: memref<16x128xf32, #tpu.memory_space<vmem>>, %arg3: memref<128x512xf32, #tpu.memory_space<vmem>>, %arg4: memref<256x128xf32, #tpu.memory_space<vmem>>, %arg5: memref<16x128xf32, #tpu.memory_space<vmem>>) attributes {dimension_semantics = [#tpu.dimension_semantics<parallel>, #tpu.dimension_semantics<arbitrary>], iteration_bounds = array<i64: 1, 1>, scalar_prefetch = 0 : i64, scratch_operands = 0 : i64, tpu.core_type = #tpu.core_type<tc>, window_params = [{transform_indices = @transform_0, window_bounds = array<i64: 16, 128>}, {transform_indices = @transform_1, window_bounds = array<i64: 128, 512>}, {transform_indices = @transform_2, window_bounds = array<i64: 256, 128>}, {transform_indices = @transform_3, window_bounds = array<i64: 16, 128>}]} {
    %c0_i32 = arith.constant 0 : i32
    %0 = arith.cmpi eq, %arg1, %c0_i32 : i32
    %1 = arith.extui %0 : i1 to i32
    %c0_i32_0 = arith.constant 0 : i32
    %2 = arith.cmpi ne, %1, %c0_i32_0 : i32
    scf.if %2 {
      %cst_12 = arith.constant 0.000000e+00 : f32
      %20 = vector.broadcast %cst_12 : f32 to vector<16x128xf32>
      %c0_13 = arith.constant 0 : index
      %c0_14 = arith.constant 0 : index
      %21 = vector.load %arg5[%c0_13, %c0_14] : memref<16x128xf32, #tpu.memory_space<vmem>>, vector<16x128xf32>
      tpu.vector_store %arg5[%c0_13, %c0_14], %20 {strides = array<i32>} : memref<16x128xf32, #tpu.memory_space<vmem>>, vector<16x128xf32>,
    } else {
    }
    %c0 = arith.constant 0 : index
    %c0_1 = arith.constant 0 : index
    %3 = vector.load %arg2[%c0, %c0_1] : memref<16x128xf32, #tpu.memory_space<vmem>>, vector<16x128xf32>
    %c0_2 = arith.constant 0 : index
    %c0_3 = arith.constant 0 : index
    %4 = vector.load %arg3[%c0_2, %c0_3] : memref<128x512xf32, #tpu.memory_space<vmem>>, vector<128x512xf32>
    %cst = arith.constant dense<0.000000e+00> : vector<16x512xf32>
    %5 = tpu.matmul %3, %4, %cst {dimension_numbers = #tpu.dot_dimension_numbers<[1], [0], [0], [1], [0, 0, 1, 1], [], []>} : vector<16x128xf32>, vector<128x512xf32>, vector<16x512xf32> -> vector<16x512xf32>
    %6 = vector.extract_strided_slice %5 {offsets = [0, 0], sizes = [16, 256], strides = [1, 1]} : vector<16x512xf32> to vector<16x256xf32>
    %7 = vector.extract_strided_slice %5 {offsets = [0, 256], sizes = [16, 256], strides = [1, 1]} : vector<16x512xf32> to vector<16x256xf32>
    %8 = arith.negf %6 : vector<16x256xf32>
    %9 = math.exp %8 : vector<16x256xf32>
    %cst_4 = arith.constant 1.000000e+00 : f32
    %10 = vector.broadcast %cst_4 : f32 to vector<16x256xf32>
    %11 = arith.addf %10, %9 : vector<16x256xf32>
    %12 = arith.divf %10, %11 : vector<16x256xf32>
    %13 = arith.mulf %6, %12 : vector<16x256xf32>
    %14 = arith.mulf %13, %7 : vector<16x256xf32>
    %c0_5 = arith.constant 0 : index
    %c0_6 = arith.constant 0 : index
    %15 = vector.load %arg5[%c0_5, %c0_6] : memref<16x128xf32, #tpu.memory_space<vmem>>, vector<16x128xf32>
    %c0_7 = arith.constant 0 : index
    %c0_8 = arith.constant 0 : index
    %16 = vector.load %arg4[%c0_7, %c0_8] : memref<256x128xf32, #tpu.memory_space<vmem>>, vector<256x128xf32>
    %cst_9 = arith.constant dense<0.000000e+00> : vector<16x128xf32>
    %17 = tpu.matmul %14, %16, %cst_9 {dimension_numbers = #tpu.dot_dimension_numbers<[1], [0], [0], [1], [0, 0, 1, 1], [], []>} : vector<16x256xf32>, vector<256x128xf32>, vector<16x128xf32> -> vector<16x128xf32>
    %18 = arith.addf %15, %17 : vector<16x128xf32>
    %c0_10 = arith.constant 0 : index
    %c0_11 = arith.constant 0 : index
    %19 = vector.load %arg5[%c0_10, %c0_11] : memref<16x128xf32, #tpu.memory_space<vmem>>, vector<16x128xf32>
    tpu.vector_store %arg5[%c0_10, %c0_11], %18 {strides = array<i32>} : memref<16x128xf32, #tpu.memory_space<vmem>>, vector<16x128xf32>,
    return
  }
  func.func @transform_0(%arg0: i32, %arg1: i32) -> (i32, i32) {
    %c0_i32 = arith.constant 0 : i32
    %c0_i32_0 = arith.constant 0 : i32
    return %arg0, %c0_i32 : i32, i32
  }
  func.func @transform_1(%arg0: i32, %arg1: i32) -> (i32, i32) {
    %c0_i32 = arith.constant 0 : i32
    %c0_i32_0 = arith.constant 0 : i32
    return %c0_i32, %arg1 : i32, i32
  }
  func.func @transform_2(%arg0: i32, %arg1: i32) -> (i32, i32) {
    %c0_i32 = arith.constant 0 : i32
    %c0_i32_0 = arith.constant 0 : i32
    return %arg1, %c0_i32 : i32, i32
  }
  func.func @transform_3(%arg0: i32, %arg1: i32) -> (i32, i32) {
    %c0_i32 = arith.constant 0 : i32
    %c0_i32_0 = arith.constant 0 : i32
    return %arg0, %c0_i32 : i32, i32
  }
}

</mosaic_0001>

<llo_original>
// kernel: _apply.1
$region0: #{_apply.1}
  #allocation0 [shape = 'u32[]', space=smem, size = 0x4, offset = 0x4, fixed_abs, tag = 'smem constant byte address 0x4 - core index']
  #allocation1 [shape = 'u32[144,128]{1,0:T(1,128)}', space=vmem, size = 0x12000, scoped, tag = 'internal scratch']
  %s0 = inlined_call_operand.hbm [shape: f32[16,128], index: 0, kind: input, shape index: {}]
  %s1 = inlined_call_operand.hbm [shape: f32[128,512], index: 1, kind: input, shape index: {}]
  %s2 = inlined_call_operand.hbm [shape: f32[256,128], index: 2, kind: input, shape index: {}]
  %s3 = inlined_call_operand.hbm [shape: f32[16,128], index: 3, kind: output, shape index: {}]
  %s4 = sld [smem:[#allocation0]]
  $region38: #{_apply.1} parent=0
    _
  %s6 = ssub.s32 1, %s4
  %s7 = scalar_select 0, %s6, %s4
  $region1: #{_apply.1} parent=0
    #allocation2 [shape = 'u8[8192]{0}', space=vmem, size = 0x2000, scoped, tag = 'input window, operand 0, single buffered']
    #allocation3 [shape = 's32[1]{0}', space=sflag, size = 0x4, scoped, tag = 'scoped memory for _apply.1']
    #allocation4 [shape = 's32[1]{0}', space=sflag, size = 0x4, scoped, tag = 'scoped memory for _apply.1']
    #allocation5 [shape = 'u8[262144]{0}', space=vmem, size = 0x40000, scoped, tag = 'input window, operand 1, single buffered']
    #allocation6 [shape = 's32[1]{0}', space=sflag, size = 0x4, scoped, tag = 'scoped memory for _apply.1']
    #allocation7 [shape = 'u8[131072]{0}', space=vmem, size = 0x20000, scoped, tag = 'input window, operand 2, single buffered']
    #allocation8 [shape = 'u8[8192]{0}', space=vmem, size = 0x2000, scoped, tag = 'output window, operand 0, single buffered']
    %8 = vsyncpa [#allocation3], 0
    %9 = vsyncpa [#allocation6], 0
    %10 = vsyncpa [#allocation4], 0
    // Predicated region
    $region2: #{_apply.1} parent=1 // pred_check
      _
    $region3: #{_apply.1} parent=1 // pred_check_branch
      %12 = sbr.rel (0) target = $region5
    $region4: #{_apply.1} parent=1 // pred_region
      %s14 = ssub.s32 256, 256
      %15 = vsyncadd [#allocation3], %s14
      %s16 = sshll.u32 [#allocation2], 4
      %s17 = int_to_ptr.vmem [resolvable:$true] %s16
      %22 = dma.hbm_to_vmem [thread:$0]  %s0, 256, %s17, [#allocation3], 128, 128, 8
    $region5: #{_apply.1} parent=1 // pred_fallthru
      _
    // Predicated region
    $region6: #{_apply.1} parent=1 // pred_check
      _
    $region7: #{_apply.1} parent=1 // pred_check_branch
      %24 = sbr.rel (0) target = $region9
    $region8: #{_apply.1} parent=1 // pred_region
      %s26 = ssub.s32 8192, 8192
      %27 = vsyncadd [#allocation6], %s26
      %s28 = sshll.u32 [#allocation5], 4
      %s29 = int_to_ptr.vmem [resolvable:$true] %s28
      %34 = dma.hbm_to_vmem [thread:$0]  %s1, 8192, %s29, [#allocation6], 512, 512, 32
    $region9: #{_apply.1} parent=1 // pred_fallthru
      _
    // Predicated region
    $region10: #{_apply.1} parent=1 // pred_check
      _
    $region11: #{_apply.1} parent=1 // pred_check_branch
      %36 = sbr.rel (0) target = $region13
    $region12: #{_apply.1} parent=1 // pred_region
      %s38 = ssub.s32 4096, 4096
      %39 = vsyncadd [#allocation6], %s38
      %s40 = sshll.u32 [#allocation7], 4
      %s41 = int_to_ptr.vmem [resolvable:$true] %s40
      %46 = dma.hbm_to_vmem [thread:$0]  %s2, 4096, %s41, [#allocation6], 128, 128, 8
    $region13: #{_apply.1} parent=1 // pred_fallthru
      _
    // Predicated region
    $region14: #{_apply.1} parent=1 // pred_check
      _
    $region15: #{_apply.1} parent=1 // pred_check_branch
      %48 = sbr.rel (0) target = $region17
    $region16: #{_apply.1} parent=1 // pred_region
      %49 = dma.done [#allocation3], 256
    $region17: #{_apply.1} parent=1 // pred_fallthru
      _
    // Predicated region
    $region18: #{_apply.1} parent=1 // pred_check
      _
    $region19: #{_apply.1} parent=1 // pred_check_branch
      %51 = sbr.rel (0) target = $region21
    $region20: #{_apply.1} parent=1 // pred_region
      %52 = dma.done [#allocation6], 8192
    $region21: #{_apply.1} parent=1 // pred_fallthru
      _
    // Predicated region
    $region22: #{_apply.1} parent=1 // pred_check
      _
    $region23: #{_apply.1} parent=1 // pred_check_branch
      %54 = sbr.rel (0) target = $region25
    $region24: #{_apply.1} parent=1 // pred_region
      %55 = dma.done [#allocation6], 4096
    $region25: #{_apply.1} parent=1 // pred_fallthru
      _
    %p56 = scmp.eq.s32.totalorder 0, 0
    // Predicated region
    $region26: #{_apply.1} parent=1 // pred_check
      %p57 = pneg %p56
    $region27: #{_apply.1} parent=1 // pred_check_branch
      %59 = sbr.rel (%p57) target = $region29
    $region28: #{_apply.1} parent=1 // pred_region
      %60 = vst [vmem:[#allocation8] sm:$0xff] 0.0
      %61 = vst [vmem:[#allocation8 + $0x8] sm:$0xff] 0.0
    $region29: #{_apply.1} parent=1 // pred_fallthru
      _
    %v62 = vld [vmem:[#allocation2] sm:$0xff]
    %v63 = vld [vmem:[#allocation2 + $0x8] sm:$0xff]
    %v64 = vld [vmem:[#allocation5] sm:$0xff]
    %v65 = vld [vmem:[#allocation5 + $0x8] sm:$0xff]
    %v66 = vld [vmem:[#allocation5 + $0x10] sm:$0xff]
    %v67 = vld [vmem:[#allocation5 + $0x18] sm:$0xff]
    %v68 = vld [vmem:[#allocation5 + $0x20] sm:$0xff]
    %v69 = vld [vmem:[#allocation5 + $0x28] sm:$0xff]
    %v70 = vld [vmem:[#allocation5 + $0x30] sm:$0xff]
    %v71 = vld [vmem:[#allocation5 + $0x38] sm:$0xff]
    %v72 = vld [vmem:[#allocation5 + $0x40] sm:$0xff]
    %v73 = vld [vmem:[#allocation5 + $0x48] sm:$0xff]
    %v74 = vld [vmem:[#allocation5 + $0x50] sm:$0xff]
    %v75 = vld [vmem:[#allocation5 + $0x58] sm:$0xff]
    %v76 = vld [vmem:[#allocation5 + $0x60] sm:$0xff]
    %v77 = vld [vmem:[#allocation5 + $0x68] sm:$0xff]
    %v78 = vld [vmem:[#allocation5 + $0x70] sm:$0xff]
    %v79 = vld [vmem:[#allocation5 + $0x78] sm:$0xff]
    %v80 = vld [vmem:[#allocation5 + $0x80] sm:$0xff]
    %v81 = vld [vmem:[#allocation5 + $0x88] sm:$0xff]
    %v82 = vld [vmem:[#allocation5 + $0x90] sm:$0xff]
    %v83 = vld [vmem:[#allocation5 + $0x98] sm:$0xff]
    %v84 = vld [vmem:[#allocation5 + $0xa0] sm:$0xff]
    %v85 = vld [vmem:[#allocation5 + $0xa8] sm:$0xff]
    %v86 = vld [vmem:[#allocation5 + $0xb0] sm:$0xff]
    %v87 = vld [vmem:[#allocation5 + $0xb8] sm:$0xff]
    %v88 = vld [vmem:[#allocation5 + $0xc0] sm:$0xff]
    %v89 = vld [vmem:[#allocation5 + $0xc8] sm:$0xff]
    %v90 = vld [vmem:[#allocation5 + $0xd0] sm:$0xff]
    %v91 = vld [vmem:[#allocation5 + $0xd8] sm:$0xff]
    %v92 = vld [vmem:[#allocation5 + $0xe0] sm:$0xff]
    %v93 = vld [vmem:[#allocation5 + $0xe8] sm:$0xff]
    %v94 = vld [vmem:[#allocation5 + $0xf0] sm:$0xff]
    %v95 = vld [vmem:[#allocation5 + $0xf8] sm:$0xff]
    %v96 = vld [vmem:[#allocation5 + $0x100] sm:$0xff]
    %v97 = vld [vmem:[#allocation5 + $0x108] sm:$0xff]
    %v98 = vld [vmem:[#allocation5 + $0x110] sm:$0xff]
    %v99 = vld [vmem:[#allocation5 + $0x118] sm:$0xff]
    %v100 = vld [vmem:[#allocation5 + $0x120] sm:$0xff]
    %v101 = vld [vmem:[#allocation5 + $0x128] sm:$0xff]
    %v102 = vld [vmem:[#allocation5 + $0x130] sm:$0xff]
    %v103 = vld [vmem:[#allocation5 + $0x138] sm:$0xff]
    %v104 = vld [vmem:[#allocation5 + $0x140] sm:$0xff]
    %v105 = vld [vmem:[#allocation5 + $0x148] sm:$0xff]
    %v106 = vld [vmem:[#allocation5 + $0x150] sm:$0xff]
    %v107 = vld [vmem:[#allocation5 + $0x158] sm:$0xff]
    %v108 = vld [vmem:[#allocation5 + $0x160] sm:$0xff]
    %v109 = vld [vmem:[#allocation5 + $0x168] sm:$0xff]
    %v110 = vld [vmem:[#allocation5 + $0x170] sm:$0xff]
    %v111 = vld [vmem:[#allocation5 + $0x178] sm:$0xff]
    %v112 = vld [vmem:[#allocation5 + $0x180] sm:$0xff]
    %v113 = vld [vmem:[#allocation5 + $0x188] sm:$0xff]
    %v114 = vld [vmem:[#allocation5 + $0x190] sm:$0xff]
    %v115 = vld [vmem:[#allocation5 + $0x198] sm:$0xff]
    %v116 = vld [vmem:[#allocation5 + $0x1a0] sm:$0xff]
    %v117 = vld [vmem:[#allocation5 + $0x1a8] sm:$0xff]
    %v118 = vld [vmem:[#allocation5 + $0x1b0] sm:$0xff]
    %v119 = vld [vmem:[#allocation5 + $0x1b8] sm:$0xff]
    %v120 = vld [vmem:[#allocation5 + $0x1c0] sm:$0xff]
    %v121 = vld [vmem:[#allocation5 + $0x1c8] sm:$0xff]
    %v122 = vld [vmem:[#allocation5 + $0x1d0] sm:$0xff]
    %v123 = vld [vmem:[#allocation5 + $0x1d8] sm:$0xff]
    %v124 = vld [vmem:[#allocation5 + $0x1e0] sm:$0xff]
    %v125 = vld [vmem:[#allocation5 + $0x1e8] sm:$0xff]
    %v126 = vld [vmem:[#allocation5 + $0x1f0] sm:$0xff]
    %v127 = vld [vmem:[#allocation5 + $0x1f8] sm:$0xff]
    %128 = vmatprep.subr.mxu0 %v65
    %129 = vmatpush1.msra.mxu0 %v64
    %130 = vmatprep.subr.mxu0 %v69
    %131 = vmatpush1.msra.mxu0 %v68
    %132 = vmatprep.subr.mxu0 %v73
    %133 = vmatpush1.msra.mxu0 %v72
    %134 = vmatprep.subr.mxu0 %v77
    %135 = vmatpush1.msra.mxu0 %v76
    %136 = vmatprep.subr.mxu0 %v81
    %137 = vmatpush1.msra.mxu0 %v80
    %138 = vmatprep.subr.mxu0 %v85
    %139 = vmatpush1.msra.mxu0 %v84
    %140 = vmatprep.subr.mxu0 %v89
    %141 = vmatpush1.msra.mxu0 %v88
    %142 = vmatprep.subr.mxu0 %v93
    %143 = vmatpush1.msra.mxu0 %v92
    %144 = vmatprep.subr.mxu0 %v97
    %145 = vmatpush1.msra.mxu0 %v96
    %146 = vmatprep.subr.mxu0 %v101
    %147 = vmatpush1.msra.mxu0 %v100
    %148 = vmatprep.subr.mxu0 %v105
    %149 = vmatpush1.msra.mxu0 %v104
    %150 = vmatprep.subr.mxu0 %v109
    %151 = vmatpush1.msra.mxu0 %v108
    %152 = vmatprep.subr.mxu0 %v113
    %153 = vmatpush1.msra.mxu0 %v112
    %154 = vmatprep.subr.mxu0 %v117
    %155 = vmatpush1.msra.mxu0 %v116
    %156 = vmatprep.subr.mxu0 %v121
    %157 = vmatpush1.msra.mxu0 %v120
    %158 = vmatprep.subr.mxu0 %v125
    %159 = vmatpush1.msra.mxu0 %v124
    %160 = vmatprep.subr.mxu0 0.0
    %161 = vmatpush1.msra.mxu0 0.0
    %162 = vmatprep.subr.mxu0 0.0
    %163 = vmatpush1.msra.mxu0 0.0
    %164 = vmatprep.subr.mxu0 0.0
    %165 = vmatpush1.msra.mxu0 0.0
    %166 = vmatprep.subr.mxu0 0.0
    %167 = vmatpush1.msra.mxu0 0.0
    %168 = vmatprep.subr.mxu0 0.0
    %169 = vmatpush1.msra.mxu0 0.0
    %170 = vmatprep.subr.mxu0 0.0
    %171 = vmatpush1.msra.mxu0 0.0
    %172 = vmatprep.subr.mxu0 0.0
    %173 = vmatpush1.msra.mxu0 0.0
    %174 = vmatprep.subr.mxu0 0.0
    %175 = vmatpush1.msra.mxu0 0.0
    %176 = vmatprep.subr.mxu0 0.0
    %177 = vmatpush1.msra.mxu0 0.0
    %178 = vmatprep.subr.mxu0 0.0
    %179 = vmatpush1.msra.mxu0 0.0
    %180 = vmatprep.subr.mxu0 0.0
    %181 = vmatpush1.msra.mxu0 0.0
    %182 = vmatprep.subr.mxu0 0.0
    %183 = vmatpush1.msra.mxu0 0.0
    %184 = vmatprep.subr.mxu0 0.0
    %185 = vmatpush1.msra.mxu0 0.0
    %186 = vmatprep.subr.mxu0 0.0
    %187 = vmatpush1.msra.mxu0 0.0
    %188 = vmatprep.subr.mxu0 0.0
    %189 = vmatpush1.msra.mxu0 0.0
    %190 = vmatprep.subr.mxu0 0.0
    %191 = vmatpush1.msra.mxu0 0.0
    %192 = vmatprep.mubr.f32.mxu0 0.0
    %193 = vmatmul.mubr.f32.gmra.mrb[0].mxu0 %v62
    %v194 = vpop.f32.mrb[0].mxu0
    %v195 = vadd.f32 0.0, %v194
    %v196 = vpop.f32.mrb[0].mxu0
    %v197 = vadd.f32 0.0, %v196
    %198 = vmatprep.mubr.f32.mxu0 0.0
    %199 = vmatmul.mubr.f32.gmra.mrb[0].mxu0 %v63
    %v200 = vpop.f32.mrb[0].mxu0
    %v201 = vadd.f32 0.0, %v200
    %v202 = vpop.f32.mrb[0].mxu0
    %v203 = vadd.f32 0.0, %v202
    %204 = vdwg.mxu0
    %205 = vmatprep.subr.mxu0 %v67
    %206 = vmatpush1.msra.mxu0 %v66
    %207 = vmatprep.subr.mxu0 %v71
    %208 = vmatpush1.msra.mxu0 %v70
    %209 = vmatprep.subr.mxu0 %v75
    %210 = vmatpush1.msra.mxu0 %v74
    %211 = vmatprep.subr.mxu0 %v79
    %212 = vmatpush1.msra.mxu0 %v78
    %213 = vmatprep.subr.mxu0 %v83
    %214 = vmatpush1.msra.mxu0 %v82
    %215 = vmatprep.subr.mxu0 %v87
    %216 = vmatpush1.msra.mxu0 %v86
    %217 = vmatprep.subr.mxu0 %v91
    %218 = vmatpush1.msra.mxu0 %v90
    %219 = vmatprep.subr.mxu0 %v95
    %220 = vmatpush1.msra.mxu0 %v94
    %221 = vmatprep.subr.mxu0 %v99
    %222 = vmatpush1.msra.mxu0 %v98
    %223 = vmatprep.subr.mxu0 %v103
    %224 = vmatpush1.msra.mxu0 %v102
    %225 = vmatprep.subr.mxu0 %v107
    %226 = vmatpush1.msra.mxu0 %v106
    %227 = vmatprep.subr.mxu0 %v111
    %228 = vmatpush1.msra.mxu0 %v110
    %229 = vmatprep.subr.mxu0 %v115
    %230 = vmatpush1.msra.mxu0 %v114
    %231 = vmatprep.subr.mxu0 %v119
    %232 = vmatpush1.msra.mxu0 %v118
    %233 = vmatprep.subr.mxu0 %v123
    %234 = vmatpush1.msra.mxu0 %v122
    %235 = vmatprep.subr.mxu0 %v127
    %236 = vmatpush1.msra.mxu0 %v126
    %237 = vmatprep.subr.mxu0 0.0
    %238 = vmatpush1.msra.mxu0 0.0
    %239 = vmatprep.subr.mxu0 0.0
    %240 = vmatpush1.msra.mxu0 0.0
    %241 = vmatprep.subr.mxu0 0.0
    %242 = vmatpush1.msra.mxu0 0.0
    %243 = vmatprep.subr.mxu0 0.0
    %244 = vmatpush1.msra.mxu0 0.0
    %245 = vmatprep.subr.mxu0 0.0
    %246 = vmatpush1.msra.mxu0 0.0
    %247 = vmatprep.subr.mxu0 0.0
    %248 = vmatpush1.msra.mxu0 0.0
    %249 = vmatprep.subr.mxu0 0.0
    %250 = vmatpush1.msra.mxu0 0.0
    %251 = vmatprep.subr.mxu0 0.0
    %252 = vmatpush1.msra.mxu0 0.0
    %253 = vmatprep.subr.mxu0 0.0
    %254 = vmatpush1.msra.mxu0 0.0
    %255 = vmatprep.subr.mxu0 0.0
    %256 = vmatpush1.msra.mxu0 0.0
    %257 = vmatprep.subr.mxu0 0.0
    %258 = vmatpush1.msra.mxu0 0.0
    %259 = vmatprep.subr.mxu0 0.0
    %260 = vmatpush1.msra.mxu0 0.0
    %261 = vmatprep.subr.mxu0 0.0
    %262 = vmatpush1.msra.mxu0 0.0
    %263 = vmatprep.subr.mxu0 0.0
    %264 = vmatpush1.msra.mxu0 0.0
    %265 = vmatprep.subr.mxu0 0.0
    %266 = vmatpush1.msra.mxu0 0.0
    %267 = vmatprep.subr.mxu0 0.0
    %268 = vmatpush1.msra.mxu0 0.0
    %269 = vmatprep.mubr.f32.mxu0 0.0
    %270 = vmatmul.mubr.f32.gmra.mrb[0].mxu0 %v62
    %v271 = vpop.f32.mrb[0].mxu0
    %v272 = vadd.f32 0.0, %v271
    %v273 = vpop.f32.mrb[0].mxu0
    %v274 = vadd.f32 0.0, %v273
    %275 = vmatprep.mubr.f32.mxu0 0.0
    %276 = vmatmul.mubr.f32.gmra.mrb[0].mxu0 %v63
    %v277 = vpop.f32.mrb[0].mxu0
    %v278 = vadd.f32 0.0, %v277
    %v279 = vpop.f32.mrb[0].mxu0
    %v280 = vadd.f32 0.0, %v279
    %281 = vdwg.mxu0
    %v282 = vxor.u32 %v195, 2147483648
    %v283 = vxor.u32 %v197, 2147483648
    %v284 = vxor.u32 %v201, 2147483648
    %v285 = vxor.u32 %v203, 2147483648
    %v286 = vmul.f32 %v282, 1.442695
    %v287 = vpow.pop %v286
    %v288 = vmul.f32 %v283, 1.442695
    %v289 = vpow.pop %v288
    %v290 = vmul.f32 %v284, 1.442695
    %v291 = vpow.pop %v290
    %v292 = vmul.f32 %v285, 1.442695
    %v293 = vpow.pop %v292
    %v294 = vadd.f32 %v287, 1.0
    %v295 = vadd.f32 %v289, 1.0
    %v296 = vadd.f32 %v291, 1.0
    %v297 = vadd.f32 %v293, 1.0
    %v298 = vrcp.pop %v294
    %v299 = vmul.f32 1.0, %v298
    %v300 = vrcp.pop %v295
    %v301 = vmul.f32 1.0, %v300
    %v302 = vrcp.pop %v296
    %v303 = vmul.f32 1.0, %v302
    %v304 = vrcp.pop %v297
    %v305 = vmul.f32 1.0, %v304
    %v306 = vmul.f32 %v195, %v299
    %v307 = vmul.f32 %v197, %v301
    %v308 = vmul.f32 %v201, %v303
    %v309 = vmul.f32 %v203, %v305
    %v310 = vmul.f32 %v306, %v272
    %v311 = vmul.f32 %v307, %v274
    %v312 = vmul.f32 %v308, %v278
    %v313 = vmul.f32 %v309, %v280
    %v314 = vld [vmem:[#allocation8] sm:$0xff]
    %v315 = vld [vmem:[#allocation8 + $0x8] sm:$0xff]
    %v316 = vld [vmem:[#allocation7] sm:$0xff]
    %v317 = vld [vmem:[#allocation7 + $0x8] sm:$0xff]
    %v318 = vld [vmem:[#allocation7 + $0x10] sm:$0xff]
    %v319 = vld [vmem:[#allocation7 + $0x18] sm:$0xff]
    %v320 = vld [vmem:[#allocation7 + $0x20] sm:$0xff]
    %v321 = vld [vmem:[#allocation7 + $0x28] sm:$0xff]
    %v322 = vld [vmem:[#allocation7 + $0x30] sm:$0xff]
    %v323 = vld [vmem:[#allocation7 + $0x38] sm:$0xff]
    %v324 = vld [vmem:[#allocation7 + $0x40] sm:$0xff]
    %v325 = vld [vmem:[#allocation7 + $0x48] sm:$0xff]
    %v326 = vld [vmem:[#allocation7 + $0x50] sm:$0xff]
    %v327 = vld [vmem:[#allocation7 + $0x58] sm:$0xff]
    %v328 = vld [vmem:[#allocation7 + $0x60] sm:$0xff]
    %v329 = vld [vmem:[#allocation7 + $0x68] sm:$0xff]
    %v330 = vld [vmem:[#allocation7 + $0x70] sm:$0xff]
    %v331 = vld [vmem:[#allocation7 + $0x78] sm:$0xff]
    %v332 = vld [vmem:[#allocation7 + $0x80] sm:$0xff]
    %v333 = vld [vmem:[#allocation7 + $0x88] sm:$0xff]
    %v334 = vld [vmem:[#allocation7 + $0x90] sm:$0xff]
    %v335 = vld [vmem:[#allocation7 + $0x98] sm:$0xff]
    %v336 = vld [vmem:[#allocation7 + $0xa0] sm:$0xff]
    %v337 = vld [vmem:[#allocation7 + $0xa8] sm:$0xff]
    %v338 = vld [vmem:[#allocation7 + $0xb0] sm:$0xff]
    %v339 = vld [vmem:[#allocation7 + $0xb8] sm:$0xff]
    %v340 = vld [vmem:[#allocation7 + $0xc0] sm:$0xff]
    %v341 = vld [vmem:[#allocation7 + $0xc8] sm:$0xff]
    %v342 = vld [vmem:[#allocation7 + $0xd0] sm:$0xff]
    %v343 = vld [vmem:[#allocation7 + $0xd8] sm:$0xff]
    %v344 = vld [vmem:[#allocation7 + $0xe0] sm:$0xff]
    %v345 = vld [vmem:[#allocation7 + $0xe8] sm:$0xff]
    %v346 = vld [vmem:[#allocation7 + $0xf0] sm:$0xff]
    %v347 = vld [vmem:[#allocation7 + $0xf8] sm:$0xff]
    %348 = vmatprep.subr.mxu0 0.0
    %349 = vmatpush1.msra.mxu0 %v316
    %350 = vmatprep.subr.mxu0 0.0
    %351 = vmatpush1.msra.mxu0 %v317
    %352 = vmatprep.subr.mxu0 0.0
    %353 = vmatpush1.msra.mxu0 %v318
    %354 = vmatprep.subr.mxu0 0.0
    %355 = vmatpush1.msra.mxu0 %v319
    %356 = vmatprep.subr.mxu0 0.0
    %357 = vmatpush1.msra.mxu0 %v320
    %358 = vmatprep.subr.mxu0 0.0
    %359 = vmatpush1.msra.mxu0 %v321
    %360 = vmatprep.subr.mxu0 0.0
    %361 = vmatpush1.msra.mxu0 %v322
    %362 = vmatprep.subr.mxu0 0.0
    %363 = vmatpush1.msra.mxu0 %v323
    %364 = vmatprep.subr.mxu0 0.0
    %365 = vmatpush1.msra.mxu0 %v324
    %366 = vmatprep.subr.mxu0 0.0
    %367 = vmatpush1.msra.mxu0 %v325
    %368 = vmatprep.subr.mxu0 0.0
    %369 = vmatpush1.msra.mxu0 %v326
    %370 = vmatprep.subr.mxu0 0.0
    %371 = vmatpush1.msra.mxu0 %v327
    %372 = vmatprep.subr.mxu0 0.0
    %373 = vmatpush1.msra.mxu0 %v328
    %374 = vmatprep.subr.mxu0 0.0
    %375 = vmatpush1.msra.mxu0 %v329
    %376 = vmatprep.subr.mxu0 0.0
    %377 = vmatpush1.msra.mxu0 %v330
    %378 = vmatprep.subr.mxu0 0.0
    %379 = vmatpush1.msra.mxu0 %v331
    %380 = vmatprep.subr.mxu0 0.0
    %381 = vmatpush1.msra.mxu0 %v332
    %382 = vmatprep.subr.mxu0 0.0
    %383 = vmatpush1.msra.mxu0 %v333
    %384 = vmatprep.subr.mxu0 0.0
    %385 = vmatpush1.msra.mxu0 %v334
    %386 = vmatprep.subr.mxu0 0.0
    %387 = vmatpush1.msra.mxu0 %v335
    %388 = vmatprep.subr.mxu0 0.0
    %389 = vmatpush1.msra.mxu0 %v336
    %390 = vmatprep.subr.mxu0 0.0
    %391 = vmatpush1.msra.mxu0 %v337
    %392 = vmatprep.subr.mxu0 0.0
    %393 = vmatpush1.msra.mxu0 %v338
    %394 = vmatprep.subr.mxu0 0.0
    %395 = vmatpush1.msra.mxu0 %v339
    %396 = vmatprep.subr.mxu0 0.0
    %397 = vmatpush1.msra.mxu0 %v340
    %398 = vmatprep.subr.mxu0 0.0
    %399 = vmatpush1.msra.mxu0 %v341
    %400 = vmatprep.subr.mxu0 0.0
    %401 = vmatpush1.msra.mxu0 %v342
    %402 = vmatprep.subr.mxu0 0.0
    %403 = vmatpush1.msra.mxu0 %v343
    %404 = vmatprep.subr.mxu0 0.0
    %405 = vmatpush1.msra.mxu0 %v344
    %406 = vmatprep.subr.mxu0 0.0
    %407 = vmatpush1.msra.mxu0 %v345
    %408 = vmatprep.subr.mxu0 0.0
    %409 = vmatpush1.msra.mxu0 %v346
    %410 = vmatprep.subr.mxu0 0.0
    %411 = vmatpush1.msra.mxu0 %v347
    %412 = vmatprep.mubr.f32.mxu0 %v311
    %413 = vmatmul.mubr.f32.gmra.mrb[0].mxu0 %v310
    %v414 = vpop.f32.mrb[0].mxu0
    %v415 = vadd.f32 0.0, %v414
    %v416 = vpop.f32.mrb[0].mxu0
    %417 = vmatprep.mubr.f32.mxu0 %v313
    %418 = vmatmul.mubr.f32.gmra.mrb[0].mxu0 %v312
    %v419 = vpop.f32.mrb[0].mxu0
    %v420 = vadd.f32 0.0, %v419
    %v421 = vpop.f32.mrb[0].mxu0
    %422 = vdwg.mxu0
    %v423 = vadd.f32 %v314, %v415
    %v424 = vadd.f32 %v315, %v420
    %425 = vst [vmem:[#allocation8] sm:$0xff] %v423
    %426 = vst [vmem:[#allocation8 + $0x8] sm:$0xff] %v424
    // Predicated region
    $region30: #{_apply.1} parent=1 // pred_check
      _
    $region31: #{_apply.1} parent=1 // pred_check_branch
      %428 = sbr.rel (0) target = $region33
    $region32: #{_apply.1} parent=1 // pred_region
      %s430 = ssub.s32 256, 256
      %431 = vsyncadd [#allocation4], %s430
      %s432 = sshll.u32 [#allocation8], 4
      %s433 = int_to_ptr.vmem [resolvable:$true] %s432
      %438 = dma.vmem_to_hbm [thread:$0]  %s433, 256, %s3, [#allocation4], 128, 128, 8
    $region33: #{_apply.1} parent=1 // pred_fallthru
      _
    // Predicated region
    $region34: #{_apply.1} parent=1 // pred_check
      _
    $region35: #{_apply.1} parent=1 // pred_check_branch
      %440 = sbr.rel (0) target = $region37
    $region36: #{_apply.1} parent=1 // pred_region
      %441 = dma.done [#allocation4], 256
    $region37: #{_apply.1} parent=1 // pred_fallthru
      _
    %442 = vsyncpa [#allocation3], 1
    %443 = vsyncpa [#allocation6], 1
    %444 = vsyncpa [#allocation4], 1

</llo_original>
